<compile_context>
chip_gen: v6e
topology: v6e:2x2x1
jax: 0.10.0
libtpu: 0.0.40
codegen_flags: <defaults>
</compile_context>

<pallas_src>
import jax
import jax.numpy as jnp
from jax.experimental import pallas as pl
from jax.experimental.pallas import tpu as pltpu


# ----------------------------------------------------------------------------
# helpers
# ----------------------------------------------------------------------------
def _round_up(x, m):
    return (x + m - 1) // m * m


def _pick_div(size, candidates):
    for t in candidates:
        if size % t == 0:
            return t
    return size


def _pick_tm(n_pad, candidates=(512, 256, 128)):
    # Prefer an even number of row tiles so megacore (v7x: 2 TCs) load-balances.
    for t in candidates:
        if n_pad % t == 0 and (n_pad // t) % 2 == 0:
            return t
    for t in candidates:
        if n_pad % t == 0:
            return t
    return n_pad


def _vmem_budget_bytes():
    # Generation-aware VMEM cap: ~75% of physical capacity
    # (v7x 64 MiB -> ~48 MiB; v5e/v6e 128 MiB -> ~96 MiB).
    try:
        cap = int(pltpu.get_tpu_info().vmem_capacity_bytes)
    except Exception:
        cap = 64 * 1024 * 1024  # conservative (v7x-sized) fallback
    return max(int(0.75 * cap), 16 * 1024 * 1024)


# ----------------------------------------------------------------------------
# Pallas kernel: K-tiled  (TM, TK) @ (TK, TC)  ->  (TM, TC)  f32 accumulation
# ----------------------------------------------------------------------------
def _adj_matmul_kernel(adj_ref, x_ref, o_ref, acc_ref):
    @pl.when(pl.program_id(2) == 0)
    def _init():
        acc_ref[...] = jnp.zeros_like(acc_ref)

    acc_ref[...] += jnp.dot(adj_ref[...], x_ref[...],
                            preferred_element_type=jnp.float32)

    @pl.when(pl.program_id(2) == pl.num_programs(2) - 1)
    def _store():
        o_ref[...] = acc_ref[...]


def _adj_matmul(adj_p, x_p, tm, tc, tk):
    """out = adj_p @ x_p with a (rows, cols, K)-tiled, auto-pipelined grid."""
    n_pad = adj_p.shape[0]
    c_pad = x_p.shape[1]
    grid = (n_pad // tm, c_pad // tc, n_pad // tk)
    grid_m, grid_n = grid[0], grid[1]

    a_bytes = int(adj_p.dtype.itemsize)
    x_bytes = int(x_p.dtype.itemsize)

    # Double-buffered per-step working set + resident f32 accumulator.
    # K-tiling makes this O(tm*tk + tk*tc): independent of N.
    vmem_need = (2 * (tm * tk * a_bytes + tk * tc * x_bytes + tm * tc * 4)
                 + tm * tc * 4)
    vmem_limit = int(min(max(4 * vmem_need, 32 * 1024 * 1024),
                         _vmem_budget_bytes()))

    cost = pl.CostEstimate(
        flops=2 * n_pad * n_pad * c_pad,
        transcendentals=0,
        # adj row strips re-streamed once per output column tile,
        # x column strips re-streamed once per output row tile,
        # f32 output written once.
        bytes_accessed=(grid_n * n_pad * n_pad * a_bytes
                        + grid_m * n_pad * c_pad * x_bytes
                        + n_pad * c_pad * 4),
    )

    return pl.pallas_call(
        _adj_matmul_kernel,
        out_shape=jax.ShapeDtypeStruct((n_pad, c_pad), jnp.float32),
        grid_spec=pltpu.PrefetchScalarGridSpec(
            num_scalar_prefetch=0,
            grid=grid,
            in_specs=[
                pl.BlockSpec((tm, tk), lambda i, j, k: (i, k)),   # adj tile
                pl.BlockSpec((tk, tc), lambda i, j, k: (k, j)),   # feature tile
            ],
            out_specs=pl.BlockSpec((tm, tc), lambda i, j, k: (i, j)),
            scratch_shapes=[pltpu.VMEM((tm, tc), jnp.float32)],
        ),
        compiler_params=pltpu.CompilerParams(
            dimension_semantics=("parallel", "parallel", "arbitrary"),
            vmem_limit_bytes=vmem_limit,
        ),
        cost_estimate=cost,
    )(adj_p, x_p)


# ----------------------------------------------------------------------------
# adj preparation hoisted out of the per-call path (reusable across calls)
# ----------------------------------------------------------------------------
def prepare_adj(adj, comp_dtype=jnp.bfloat16):
    """Pad adj to a multiple of 128 and cast ONCE; reuse across forward calls
    so the pad/cast HBM pass is not paid per call."""
    n = adj.shape[0]
    n_pad = _round_up(n, 128) if n >= 128 else _round_up(n, 8)
    adj_p = jnp.zeros((n_pad, n_pad), comp_dtype)
    adj_p = adj_p.at[:n, :n].set(adj.astype(comp_dtype))
    return adj_p


# ----------------------------------------------------------------------------
# wrapper reproducing Encoder_MUST.forward
# ----------------------------------------------------------------------------
def encoder_must_forward(feat_a, feat_b, adj, params,
                         morph_trans_ratio=0.5, bn_eps=1e-5,
                         use_bf16=True, adj_prepared=None):
    """params: 'wa'(Fa,D) 'wb'(Fb,D) 'wmlp'(D,D) 'bmlp'(D,) 'gamma'(D,)
    'beta'(D,) 'mlp_out'(D,Fa).  Returns ([hid, hid2], h, z1, z2)."""
    hp = jax.lax.Precision.HIGHEST
    f32 = jnp.float32

    feat_a = feat_a.astype(f32)
    feat_b = feat_b.astype(f32)

    n = feat_a.shape[0]
    d = params["wa"].shape[1]
    fa = params["mlp_out"].shape[1]
    r = jnp.float32(morph_trans_ratio)

    if adj_prepared is None:
        comp_dtype = jnp.bfloat16 if use_bf16 else jnp.float32
        adj_prepared = prepare_adj(adj.astype(f32), comp_dtype)
    adj_p = adj_prepared
    comp_dtype = adj_p.dtype
    n_pad = adj_p.shape[0]
    # TODO(synk): int8 (v5e/v6e) / fp8-e4m3 (v7x) adj paths would halve the
    # dominant adj HBM stream; not enabled pending accuracy validation.

    tm = _pick_tm(n_pad)
    tk = _pick_div(n_pad, (1024, 512, 256, 128))

    # ---- grid-invariant small matmuls (K = 12..128), hoisted out of the grid
    xa = jnp.dot(feat_a, params["wa"], precision=hp)            # (N, D)
    xb = jnp.dot(feat_b, params["wb"], precision=hp)            # (N, D)

    use_full_slab = (4 * d <= 128)
    if use_full_slab:
        # lane-dense slab: one adj contraction yields z1 | z2 | hid | hid2_pre
        xmix = r * xa + (1.0 - r) * xb                          # (N, D)
        y = jnp.dot(xmix, params["wmlp"].T, precision=hp)       # (N, D)
        xc = jnp.concatenate([xa, xb, xmix, y], axis=1)         # (N, 4D)
        c1 = 4 * d
    else:
        # wide-D: drop the redundant Xmix / Y columns (derivable from z1/z2)
        xc = jnp.concatenate([xa, xb], axis=1)                  # (N, 2D)
        c1 = 2 * d

    c1_pad = _round_up(c1, 128)
    tc1 = _pick_div(c1_pad, (512, 256, 128))
    xc_p = jnp.zeros((n_pad, c1_pad), comp_dtype)
    xc_p = xc_p.at[:n, :c1].set(xc.astype(comp_dtype))

    # ---- pass 1: S = adj @ slab  (Pallas, K-tiled) ---------------------------
    s = _adj_matmul(adj_p, xc_p, tm, tc1, tk)[:n, :c1]          # (N, c1) f32
    z1 = s[:, 0 * d:1 * d]
    z2 = s[:, 1 * d:2 * d]
    if use_full_slab:
        hid = s[:, 2 * d:3 * d]
        hid2_pre = s[:, 3 * d:4 * d] + params["bmlp"].reshape(1, d)
    else:
        hid = r * z1 + (1.0 - r) * z2
        hid2_pre = (jnp.dot(hid, params["wmlp"].T, precision=hp)
                    + params["bmlp"].reshape(1, d))

    # ---- BatchNorm1d (training mode, biased batch stats over N) -------------
    # Tiny O(N*D) step between the two O(N^2) adj passes.
    mean = jnp.mean(hid2_pre, axis=0, keepdims=True)
    var = jnp.mean(jnp.square(hid2_pre - mean), axis=0, keepdims=True)
    inv_std = jax.lax.rsqrt(var + jnp.float32(bn_eps))
    hid2 = ((hid2_pre - mean) * inv_std * params["gamma"].reshape(1, d)
            + params["beta"].reshape(1, d))
    # TODO(synk): eval-mode BN (running stats) and the running-stat update side
    # effect are not reproduced; training-mode batch stats are used.

    # ---- pass 2: h = adj @ (hid2 @ mlp_out)  (Pallas, K-tiled) ---------------
    # TODO(synk): for moderate N both adj passes could share one pallas_call
    # with adj resident in VMEM (halves the dominant HBM stream); BN couples
    # all rows, so it needs full adj residency — not implemented here.
    t = jnp.dot(hid2, params["mlp_out"], precision=hp)          # (N, Fa), K=D small
    c2_pad = _round_up(fa, 128)
    tc2 = _pick_div(c2_pad, (512, 256, 128))
    t_p = jnp.zeros((n_pad, c2_pad), comp_dtype)
    t_p = t_p.at[:n, :fa].set(t.astype(comp_dtype))

    h = _adj_matmul(adj_p, t_p, tm, tc2, tk)[:n, :fa]           # (N, Fa) f32

    return [hid, hid2], h, z1, z2


# ----------------------------------------------------------------------------
# reference + test harness
# ----------------------------------------------------------------------------
def _xavier_uniform(key, shape):
    fan_in, fan_out = shape[0], shape[1]
    bound = jnp.sqrt(6.0 / (fan_in + fan_out))
    return jax.random.uniform(key, shape, jnp.float32, -bound, bound)


def _make_params(key, in_features_a, in_features_b, out_features):
    k_wa, k_wb, k_mlp_out, k_wmlp, k_bmlp = jax.random.split(key, 5)
    d = out_features
    return {
        "wa": _xavier_uniform(k_wa, (in_features_a, d)),
        # NOTE: the module's reset_parameters() would zero encoder_b weights;
        # we use random weights here so the z2 path is numerically exercised.
        "wb": _xavier_uniform(k_wb, (in_features_b, d)),
        "wmlp": jax.random.uniform(k_wmlp, (d, d), jnp.float32,
                                   -1.0 / jnp.sqrt(d), 1.0 / jnp.sqrt(d)),
        "bmlp": jax.random.uniform(k_bmlp, (d,), jnp.float32,
                                   -1.0 / jnp.sqrt(d), 1.0 / jnp.sqrt(d)),
        "gamma": jnp.ones((d,), jnp.float32),
        "beta": jnp.zeros((d,), jnp.float32),
        "mlp_out": _xavier_uniform(k_mlp_out, (d, in_features_a)),
    }


def _reference_forward(feat_a, feat_b, adj, params, r=0.5, eps=1e-5):
    hp = jax.lax.Precision.HIGHEST
    z1 = jnp.dot(adj, jnp.dot(feat_a, params["wa"], precision=hp), precision=hp)
    z2 = jnp.dot(adj, jnp.dot(feat_b, params["wb"], precision=hp), precision=hp)
    hid = r * z1 + (1.0 - r) * z2
    hid2 = jnp.dot(hid, params["wmlp"].T, precision=hp) + params["bmlp"]
    mean = hid2.mean(0, keepdims=True)
    var = ((hid2 - mean) ** 2).mean(0, keepdims=True)
    hid2 = (hid2 - mean) / jnp.sqrt(var + eps) * params["gamma"] + params["beta"]
    h = jnp.dot(adj, jnp.dot(hid2, params["mlp_out"], precision=hp), precision=hp)
    return [hid, hid2], h, z1, z2


def _check(outs, refs, atol, rtol, tag):
    (hid_l, h, z1, z2) = outs
    (rhid_l, rh, rz1, rz2) = refs
    pairs = [("hiden_emb", hid_l[0], rhid_l[0]),
             ("hiden_emb2", hid_l[1], rhid_l[1]),
             ("h", h, rh), ("z1", z1, rz1), ("z2", z2, rz2)]
    for name, a, b in pairs:
        err = float(jnp.max(jnp.abs(a - b)))
        assert bool(jnp.allclose(a, b, atol=atol, rtol=rtol)), (
            f"{tag}:{name} mismatch, max_abs_err={err:.3e}")


if __name__ == "__main__":
    # Small shapes consistent with the module: N spots, Fa/Fb features, D hidden.
    N, Fa, Fb, D = 256, 128, 96, 32
    key = jax.random.PRNGKey(0)
    k_fa, k_fb, k_adj1, k_adj2, k_par = jax.random.split(key, 5)

    feat_a = jax.random.normal(k_fa, (N, Fa), jnp.float32)
    feat_b = jax.random.normal(k_fb, (N, Fb), jnp.float32)

    # sparse-ish neighbor graph (self loops + ~15% random edges), row-normalized;
    # torch.sparse.mm(adj, .) is numerically identical to dense adj @ (.)
    mask = (jax.random.uniform(k_adj1, (N, N), jnp.float32) < 0.15).astype(jnp.float32)
    vals = jax.random.uniform(k_adj2, (N, N), jnp.float32)
    adj_raw = mask * vals + jnp.eye(N, dtype=jnp.float32)
    adj = adj_raw / jnp.sum(adj_raw, axis=1, keepdims=True)

    params = _make_params(k_par, Fa, Fb, D)
    refs = _reference_forward(feat_a, feat_b, adj, params)

    # f32 path: structural / numerical exactness
    outs_f32 = encoder_must_forward(feat_a, feat_b, adj, params, use_bf16=False)
    jax.block_until_ready(outs_f32)
    _check(outs_f32, refs, atol=2e-3, rtol=2e-3, tag="f32")

    # bf16 path (performance path: bf16 operands, f32 MXU accumulation) with the
    # adj pad/cast hoisted out of the call and reusable across calls/layers.
    adj_p_bf16 = prepare_adj(adj, jnp.bfloat16)
    outs_bf16 = encoder_must_forward(feat_a, feat_b, adj, params,
                                     use_bf16=True, adj_prepared=adj_p_bf16)
    jax.block_until_ready(outs_bf16)
    _check(outs_bf16, refs, atol=6e-2, rtol=6e-2, tag="bf16")

    print("KERNEL_OK")
</pallas_src>

<mosaic_0001>
module attributes {stable_mosaic.version = 11 : i64} {
  func.func @_adj_matmul_kernel(%arg0: i32, %arg1: i32, %arg2: i32, %arg3: memref<128x256xf32, #tpu.memory_space<vmem>>, %arg4: memref<256x128xf32, #tpu.memory_space<vmem>>, %arg5: memref<128x128xf32, #tpu.memory_space<vmem>>, %arg6: memref<128x128xf32, #tpu.memory_space<vmem>>) attributes {dimension_semantics = [#tpu.dimension_semantics<parallel>, #tpu.dimension_semantics<parallel>, #tpu.dimension_semantics<arbitrary>], iteration_bounds = array<i64: 2, 1, 1>, scalar_prefetch = 0 : i64, scratch_operands = 1 : i64, tpu.core_type = #tpu.core_type<tc>, window_params = [{transform_indices = @transform_0, window_bounds = array<i64: 128, 256>}, {transform_indices = @transform_1, window_bounds = array<i64: 256, 128>}, {transform_indices = @transform_2, window_bounds = array<i64: 128, 128>}]} {
    %c0_i32 = arith.constant 0 : i32
    %0 = arith.cmpi eq, %arg2, %c0_i32 : i32
    %1 = arith.extui %0 : i1 to i32
    %c0_i32_0 = arith.constant 0 : i32
    %2 = arith.cmpi ne, %1, %c0_i32_0 : i32
    scf.if %2 {
      %cst_10 = arith.constant 0.000000e+00 : f32
      %12 = vector.broadcast %cst_10 : f32 to vector<128x128xf32>
      %c0_11 = arith.constant 0 : index
      %c0_12 = arith.constant 0 : index
      %13 = vector.load %arg6[%c0_11, %c0_12] : memref<128x128xf32, #tpu.memory_space<vmem>>, vector<128x128xf32>
      tpu.vector_store %arg6[%c0_11, %c0_12], %12 {strides = array<i32>} : memref<128x128xf32, #tpu.memory_space<vmem>>, vector<128x128xf32>,
    } else {
    }
    %c0 = arith.constant 0 : index
    %c0_1 = arith.constant 0 : index
    %3 = vector.load %arg6[%c0, %c0_1] : memref<128x128xf32, #tpu.memory_space<vmem>>, vector<128x128xf32>
    %c0_2 = arith.constant 0 : index
    %c0_3 = arith.constant 0 : index
    %4 = vector.load %arg3[%c0_2, %c0_3] : memref<128x256xf32, #tpu.memory_space<vmem>>, vector<128x256xf32>
    %c0_4 = arith.constant 0 : index
    %c0_5 = arith.constant 0 : index
    %5 = vector.load %arg4[%c0_4, %c0_5] : memref<256x128xf32, #tpu.memory_space<vmem>>, vector<256x128xf32>
    %cst = arith.constant dense<0.000000e+00> : vector<128x128xf32>
    %6 = tpu.matmul %4, %5, %cst {dimension_numbers = #tpu.dot_dimension_numbers<[1], [0], [0], [1], [0, 0, 1, 1], [], []>} : vector<128x256xf32>, vector<256x128xf32>, vector<128x128xf32> -> vector<128x128xf32>
    %7 = arith.addf %3, %6 : vector<128x128xf32>
    %c0_6 = arith.constant 0 : index
    %c0_7 = arith.constant 0 : index
    %8 = vector.load %arg6[%c0_6, %c0_7] : memref<128x128xf32, #tpu.memory_space<vmem>>, vector<128x128xf32>
    tpu.vector_store %arg6[%c0_6, %c0_7], %7 {strides = array<i32>} : memref<128x128xf32, #tpu.memory_space<vmem>>, vector<128x128xf32>,
    %c0_i32_8 = arith.constant 0 : i32
    %9 = arith.cmpi eq, %arg2, %c0_i32_8 : i32
    %10 = arith.extui %9 : i1 to i32
    %c0_i32_9 = arith.constant 0 : i32
    %11 = arith.cmpi ne, %10, %c0_i32_9 : i32
    scf.if %11 {
      %c0_10 = arith.constant 0 : index
      %c0_11 = arith.constant 0 : index
      %12 = vector.load %arg6[%c0_10, %c0_11] : memref<128x128xf32, #tpu.memory_space<vmem>>, vector<128x128xf32>
      %c0_12 = arith.constant 0 : index
      %c0_13 = arith.constant 0 : index
      %13 = vector.load %arg5[%c0_12, %c0_13] : memref<128x128xf32, #tpu.memory_space<vmem>>, vector<128x128xf32>
      tpu.vector_store %arg5[%c0_12, %c0_13], %12 {strides = array<i32>} : memref<128x128xf32, #tpu.memory_space<vmem>>, vector<128x128xf32>,
    } else {
    }
    return
  }
  func.func @transform_0(%arg0: i32, %arg1: i32, %arg2: i32) -> (i32, i32) {
    %c0_i32 = arith.constant 0 : i32
    return %arg0, %arg2 : i32, i32
  }
  func.func @transform_1(%arg0: i32, %arg1: i32, %arg2: i32) -> (i32, i32) {
    %c0_i32 = arith.constant 0 : i32
    return %arg2, %arg1 : i32, i32
  }
  func.func @transform_2(%arg0: i32, %arg1: i32, %arg2: i32) -> (i32, i32) {
    %c0_i32 = arith.constant 0 : i32
    return %arg0, %arg1 : i32, i32
  }
}

</mosaic_0001>

<llo_original>
// kernel: tpu_custom_call.1
$region0: #{tpu_custom_call.1}
  #allocation0 [shape = 'u32[]', space=smem, size = 0x4, offset = 0x4, fixed_abs, tag = 'smem constant byte address 0x4 - core index']
  #allocation1 [shape = 'u32[144,128]{1,0:T(1,128)}', space=vmem, size = 0x12000, scoped, tag = 'internal scratch']
  #allocation2 [shape = 'f32[128,128]{1,0:T(8,128)}', space=vmem, size = 0x10000, scoped, tag = 'scratch operand']
  %s0 = inlined_call_operand.hbm [shape: f32[256,256], index: 0, kind: input, shape index: {}]
  %s1 = inlined_call_operand.hbm [shape: f32[256,128], index: 1, kind: input, shape index: {}]
  %s2 = inlined_call_operand.hbm [shape: f32[256,128], index: 2, kind: output, shape index: {}]
  %s3 = sld [smem:[#allocation0]]
  $region57: #{tpu_custom_call.1} parent=0
    _
  %s5 = ssub.s32 1, %s3
  %s6 = scalar_select 0, %s5, %s3
  $region1: #{tpu_custom_call.1} parent=0
    #allocation3 [shape = 'u8[262144]{0}', space=vmem, size = 0x40000, scoped, tag = 'input window, operand 0']
    #allocation4 [shape = 's32[2]{0}', space=sflag, size = 0x8, scoped, tag = 'scoped memory for tpu_custom_call.1']
    #allocation5 [shape = 's32[2]{0}', space=sflag, size = 0x8, scoped, tag = 'scoped memory for tpu_custom_call.1']
    #allocation6 [shape = 'u8[131072]{0}', space=vmem, size = 0x20000, scoped, tag = 'input window, operand 1, single buffered']
    #allocation7 [shape = 's32[1]{0}', space=sflag, size = 0x4, scoped, tag = 'scoped memory for tpu_custom_call.1']
    #allocation8 [shape = 'u8[131072]{0}', space=vmem, size = 0x20000, scoped, tag = 'output window, operand 0']
    %7 = vsyncpa [#allocation4], 0
    %s8 = scalar_lea.sflag [#allocation4], 1
    %9 = vsyncpa %s8, 0
    %10 = vsyncpa [#allocation7], 0
    %11 = vsyncpa [#allocation5], 0
    %s12 = scalar_lea.sflag [#allocation5], 1
    %13 = vsyncpa %s12, 0
    loop: start=0, step=1, limit=4
    $region2: #{tpu_custom_call.1} parent=1 // loop_pre_header
      _
    $region3: #{tpu_custom_call.1} parent=1 // loop_header
      %s15 = sphi 0, %s19
      %p16 = scmp.ge.s32.totalorder %s15, 4
      %s22 = sphi 0, %s41
      %s23 = sphi 0, %s37
      %s24 = sphi 0, %s33
      %s25 = sphi 0, %s22
      %s26 = sphi 0, %s23
      %s27 = sphi 0, %s24
      %s28 = sphi 0, %s25
      %s29 = sphi 0, %s26
      %s30 = sphi 0, %s27
      %s46 = sphi 0, %s48
      %s49 = sphi 0, %s46
      %s50 = sphi 0, %s49
      %s66 = sphi 0, %s50
      %s74 = sphi 0, %s76
      %s77 = sphi 0, %s74
      %s78 = sphi 0, %s77
      %s94 = sphi 0, %s78
      %s102 = sphi 0, %s104
      %s105 = sphi 0, %s102
      %s106 = sphi 0, %s105
      %s122 = sphi 0, %s106
    $region4: #{tpu_custom_call.1} parent=1 // loop_header_branch
      %18 = sbr.rel (%p16) target = $region8
    $region5: #{tpu_custom_call.1} parent=1 // loop_body
      %s20 = ssub.s32 %s15, 1
      %s21 = ssub.s32 %s15, 2
      %s31 = sadd.s32 1, %s24
      %p32 = scmp.ge.s32.totalorder %s31, 1
      %s33 = scalar_select %p32, 0, %s31
      %s34 = sadd.s32 1, %s23
      %s35 = scalar_select %p32, %s34, %s23
      %p36 = scmp.ge.s32.totalorder %s35, 1
      %s37 = scalar_select %p36, 0, %s35
      %s38 = sadd.s32 1, %s22
      %s39 = scalar_select %p36, %s38, %s22
      %p40 = scmp.ge.s32.totalorder %s39, 2
      %s41 = scalar_select %p40, 0, %s39
      %s42 = ssub.s32 %s22, %s41
      %s43 = ssub.s32 %s24, %s33
      %s44 = sor.u32 %s42, %s43
      %p45 = scmp.eq.s32.totalorder %s44, 0
      %s47 = sadd.s32 %s46, 1
      %s48 = scalar_select %p45, %s46, %s47
      %p51 = pneg %p45
      %p52 = scmp.eq.s32.totalorder %s15, 1
      %p53 = por %p51, %p52
      %p54 = scmp.ne.s32.totalorder %s46, %s49
      %p55 = scmp.eq.s32.totalorder %s15, 0
      %p56 = por %p54, %p55
      %p57 = scmp.ne.s32.totalorder %s46, %s49
      %p58 = scmp.eq.s32.totalorder %s20, 1
      %p59 = por %p57, %p58
      %p60 = scmp.ne.s32.totalorder %s49, %s50
      %p61 = scmp.eq.s32.totalorder %s20, 0
      %p62 = por %p60, %p61
      %p63 = scmp.ne.s32.totalorder %s49, %s50
      %p64 = scmp.eq.s32.totalorder %s21, 1
      %p65 = por %p63, %p64
      %p67 = scmp.ne.s32.totalorder %s50, %s66
      %p68 = scmp.eq.s32.totalorder %s21, 0
      %p69 = por %p67, %p68
      %s70 = ssub.s32 %s24, %s33
      %s71 = ssub.s32 %s23, %s37
      %s72 = sor.u32 %s70, %s71
      %p73 = scmp.eq.s32.totalorder %s72, 0
      %s75 = sadd.s32 %s74, 1
      %s76 = scalar_select %p73, %s74, %s75
      %p79 = pneg %p73
      %p80 = scmp.eq.s32.totalorder %s15, 1
      %p81 = por %p79, %p80
      %p82 = scmp.ne.s32.totalorder %s74, %s77
      %p83 = scmp.eq.s32.totalorder %s15, 0
      %p84 = por %p82, %p83
      %p85 = scmp.ne.s32.totalorder %s74, %s77
      %p86 = scmp.eq.s32.totalorder %s20, 1
      %p87 = por %p85, %p86
      %p88 = scmp.ne.s32.totalorder %s77, %s78
      %p89 = scmp.eq.s32.totalorder %s20, 0
      %p90 = por %p88, %p89
      %p91 = scmp.ne.s32.totalorder %s77, %s78
      %p92 = scmp.eq.s32.totalorder %s21, 1
      %p93 = por %p91, %p92
      %p95 = scmp.ne.s32.totalorder %s78, %s94
      %p96 = scmp.eq.s32.totalorder %s21, 0
      %p97 = por %p95, %p96
      %s98 = ssub.s32 %s22, %s41
      %s99 = ssub.s32 %s23, %s37
      %s100 = sor.u32 %s98, %s99
      %p101 = scmp.eq.s32.totalorder %s100, 0
      %s103 = sadd.s32 %s102, 1
      %s104 = scalar_select %p101, %s102, %s103
      %p107 = pneg %p101
      %p108 = scmp.eq.s32.totalorder %s15, 1
      %p109 = por %p107, %p108
      %p110 = scmp.ne.s32.totalorder %s102, %s105
      %p111 = scmp.eq.s32.totalorder %s15, 0
      %p112 = por %p110, %p111
      %p113 = scmp.ne.s32.totalorder %s102, %s105
      %p114 = scmp.eq.s32.totalorder %s20, 1
      %p115 = por %p113, %p114
      %p116 = scmp.ne.s32.totalorder %s105, %s106
      %p117 = scmp.eq.s32.totalorder %s20, 0
      %p118 = por %p116, %p117
      %p119 = scmp.ne.s32.totalorder %s105, %s106
      %p120 = scmp.eq.s32.totalorder %s21, 1
      %p121 = por %p119, %p120
      %p123 = scmp.ne.s32.totalorder %s106, %s122
      %p124 = scmp.eq.s32.totalorder %s21, 0
      %p125 = por %p123, %p124
      %p126 = scmp.le.s32.totalorder 1, %s15
      %p127 = scmp.lt.s32.totalorder %s15, 3
      %p128 = pnand %p126, %p127
      %p129 = pneg %p128
      // Predicated region
      $region9: #{tpu_custom_call.1} parent=5 // pred_check
        _
      $region10: #{tpu_custom_call.1} parent=5 // pred_check_branch
        %131 = sbr.rel (%p128) target = $region12
      $region11: #{tpu_custom_call.1} parent=5 // pred_region
        %s132 = ssub.s32 %s15, 1
        // Predicated region
        $region13: #{tpu_custom_call.1} parent=11 // pred_check
          %p133 = pneg %p90
        $region14: #{tpu_custom_call.1} parent=11 // pred_check_branch
          %135 = sbr.rel (%p133) target = $region16
        $region15: #{tpu_custom_call.1} parent=11 // pred_region
          %s136 = smul.u32 32, %s27
          %s138 = ssub.s32 4096, 4096
          %139 = vsyncadd [#allocation7], %s138
          %s140 = sadd.s32 %s26, %s136
          %s141 = smul.addr %s140, 128
          %s142 = scalar_lea.hbm %s1, %s141
          %s143 = sshll.u32 [#allocation6], 4
          %s144 = int_to_ptr.vmem [resolvable:$true] %s143
          %149 = dma.hbm_to_vmem [thread:$0]  %s142, 4096, %s144, [#allocation7], 128, 128, 8
        $region16: #{tpu_custom_call.1} parent=11 // pred_fallthru
          _
      $region12: #{tpu_custom_call.1} parent=5 // pred_fallthru
        _
      %p150 = scmp.lt.s32.totalorder %s15, 2
      // Predicated region
      $region17: #{tpu_custom_call.1} parent=5 // pred_check
        %p151 = pneg %p150
      $region18: #{tpu_custom_call.1} parent=5 // pred_check_branch
        %153 = sbr.rel (%p151) target = $region20
      $region19: #{tpu_custom_call.1} parent=5 // pred_region
        // Predicated region
        $region21: #{tpu_custom_call.1} parent=19 // pred_check
          %p154 = pneg %p56
        $region22: #{tpu_custom_call.1} parent=19 // pred_check_branch
          %156 = sbr.rel (%p154) target = $region24
        $region23: #{tpu_custom_call.1} parent=19 // pred_region
          %s157 = sand.u32 %s46, 1
          %s158 = scalar_lea.sflag [#allocation4], %s157
          %s159 = sand.u32 %s46, 1
          %s160 = smul.addr %s159, 256
          %s161 = scalar_lea.vmem [#allocation3], %s160
          %s162 = smul.u32 16, %s22
          %s163 = smul.u32 2, %s24
          %s165 = ssub.s32 4096, 4096
          %166 = vsyncadd %s158, %s165
          %s167 = smul.addr %s162, 2
          %s168 = sadd.s32 %s163, %s167
          %s169 = smul.addr %s168, 128
          %s170 = scalar_lea.hbm %s0, %s169
          %s171 = sshll.u32 %s161, 4
          %s172 = int_to_ptr.vmem [resolvable:$true] %s171
          %177 = dma.hbm_to_vmem [thread:$0]  %s170, 4096, %s172, %s158, 256, 256, 16
        $region24: #{tpu_custom_call.1} parent=19 // pred_fallthru
          _
      $region20: #{tpu_custom_call.1} parent=5 // pred_fallthru
        _
      %p178 = scmp.le.s32.totalorder 1, %s15
      %p179 = scmp.lt.s32.totalorder %s15, 3
      %p180 = pnand %p178, %p179
      %p181 = pneg %p180
      // Predicated region
      $region25: #{tpu_custom_call.1} parent=5 // pred_check
        _
      $region26: #{tpu_custom_call.1} parent=5 // pred_check_branch
        %183 = sbr.rel (%p180) target = $region28
      $region27: #{tpu_custom_call.1} parent=5 // pred_region
        %s184 = ssub.s32 %s15, 1
        %s185 = sand.u32 %s49, 1
        %s186 = scalar_lea.sflag [#allocation4], %s185
        %s187 = sand.u32 %s49, 1
        %s188 = smul.addr %s187, 256
        %s189 = scalar_lea.vmem [#allocation3], %s188
        // Predicated region
        $region29: #{tpu_custom_call.1} parent=27 // pred_check
          %p190 = pneg %p62
        $region30: #{tpu_custom_call.1} parent=27 // pred_check_branch
          %192 = sbr.rel (%p190) target = $region32
        $region31: #{tpu_custom_call.1} parent=27 // pred_region
          %193 = dma.done %s186, 4096
        $region32: #{tpu_custom_call.1} parent=27 // pred_fallthru
          _
        // Predicated region
        $region33: #{tpu_custom_call.1} parent=27 // pred_check
          %p194 = pneg %p90
        $region34: #{tpu_custom_call.1} parent=27 // pred_check_branch
          %196 = sbr.rel (%p194) target = $region36
        $region35: #{tpu_custom_call.1} parent=27 // pred_region
          %197 = dma.done [#allocation7], 4096
        $region36: #{tpu_custom_call.1} parent=27 // pred_fallthru
          _
        %s198 = sand.u32 %s49, 1
        %s199 = scalar_lea.sflag [#allocation4], %s198
        %s200 = sand.u32 %s49, 1
        %s201 = smul.addr %s200, 256
        %s202 = scalar_lea.vmem [#allocation3], %s201
        %p203 = pneg %p62
        %p204 = pneg %p59
        %p205 = pneg %p90
        %p206 = pneg %p87
        %p207 = pneg %p118
        %p208 = pneg %p115
        %s209 = sand.u32 %s105, 1
        %s210 = scalar_lea.sflag [#allocation5], %s209
        %s211 = sand.u32 %s105, 1
        %s212 = smul.addr %s211, 128
        %s213 = scalar_lea.vmem [#allocation8], %s212
        %s214 = smul.u32 16, %s25
        %s215 = smul.u32 2, %s27
        %s216 = smul.u32 32, %s27
        %s217 = smul.u32 16, %s25
        %p218 = scmp.eq.s32.totalorder %s27, 0
        // Predicated region
        $region37: #{tpu_custom_call.1} parent=27 // pred_check
          %p219 = pneg %p218
        $region38: #{tpu_custom_call.1} parent=27 // pred_check_branch
          %221 = sbr.rel (%p219) target = $region40
        $region39: #{tpu_custom_call.1} parent=27 // pred_region
          %222 = vst [vmem:[#allocation2] sm:$0xff] 0.0
          %223 = vst [vmem:[#allocation2 + $0x8] sm:$0xff] 0.0
          %224 = vst [vmem:[#allocation2 + $0x10] sm:$0xff] 0.0
          %225 = vst [vmem:[#allocation2 + $0x18] sm:$0xff] 0.0
          %226 = vst [vmem:[#allocation2 + $0x20] sm:$0xff] 0.0
          %227 = vst [vmem:[#allocation2 + $0x28] sm:$0xff] 0.0
          %228 = vst [vmem:[#allocation2 + $0x30] sm:$0xff] 0.0
          %229 = vst [vmem:[#allocation2 + $0x38] sm:$0xff] 0.0
          %230 = vst [vmem:[#allocation2 + $0x40] sm:$0xff] 0.0
          %231 = vst [vmem:[#allocation2 + $0x48] sm:$0xff] 0.0
          %232 = vst [vmem:[#allocation2 + $0x50] sm:$0xff] 0.0
          %233 = vst [vmem:[#allocation2 + $0x58] sm:$0xff] 0.0
          %234 = vst [vmem:[#allocation2 + $0x60] sm:$0xff] 0.0
          %235 = vst [vmem:[#allocation2 + $0x68] sm:$0xff] 0.0
          %236 = vst [vmem:[#allocation2 + $0x70] sm:$0xff] 0.0
          %237 = vst [vmem:[#allocation2 + $0x78] sm:$0xff] 0.0
        $region40: #{tpu_custom_call.1} parent=27 // pred_fallthru
          _
        %v238 = vld [vmem:[#allocation2] sm:$0xff]
        %v239 = vld [vmem:[#allocation2 + $0x8] sm:$0xff]
        %v240 = vld [vmem:[#allocation2 + $0x10] sm:$0xff]
        %v241 = vld [vmem:[#allocation2 + $0x18] sm:$0xff]
        %v242 = vld [vmem:[#allocation2 + $0x20] sm:$0xff]
        %v243 = vld [vmem:[#allocation2 + $0x28] sm:$0xff]
        %v244 = vld [vmem:[#allocation2 + $0x30] sm:$0xff]
        %v245 = vld [vmem:[#allocation2 + $0x38] sm:$0xff]
        %v246 = vld [vmem:[#allocation2 + $0x40] sm:$0xff]
        %v247 = vld [vmem:[#allocation2 + $0x48] sm:$0xff]
        %v248 = vld [vmem:[#allocation2 + $0x50] sm:$0xff]
        %v249 = vld [vmem:[#allocation2 + $0x58] sm:$0xff]
        %v250 = vld [vmem:[#allocation2 + $0x60] sm:$0xff]
        %v251 = vld [vmem:[#allocation2 + $0x68] sm:$0xff]
        %v252 = vld [vmem:[#allocation2 + $0x70] sm:$0xff]
        %v253 = vld [vmem:[#allocation2 + $0x78] sm:$0xff]
        %v254 = vld [vmem:[%s189] sm:$0xff]
        %v255 = vld [vmem:[%s189 + $0x8] sm:$0xff]
        %v256 = vld [vmem:[%s189 + $0x10] sm:$0xff]
        %v257 = vld [vmem:[%s189 + $0x18] sm:$0xff]
        %v258 = vld [vmem:[%s189 + $0x20] sm:$0xff]
        %v259 = vld [vmem:[%s189 + $0x28] sm:$0xff]
        %v260 = vld [vmem:[%s189 + $0x30] sm:$0xff]
        %v261 = vld [vmem:[%s189 + $0x38] sm:$0xff]
        %v262 = vld [vmem:[%s189 + $0x40] sm:$0xff]
        %v263 = vld [vmem:[%s189 + $0x48] sm:$0xff]
        %v264 = vld [vmem:[%s189 + $0x50] sm:$0xff]
        %v265 = vld [vmem:[%s189 + $0x58] sm:$0xff]
        %v266 = vld [vmem:[%s189 + $0x60] sm:$0xff]
        %v267 = vld [vmem:[%s189 + $0x68] sm:$0xff]
        %v268 = vld [vmem:[%s189 + $0x70] sm:$0xff]
        %v269 = vld [vmem:[%s189 + $0x78] sm:$0xff]
        %v270 = vld [vmem:[%s189 + $0x80] sm:$0xff]
        %v271 = vld [vmem:[%s189 + $0x88] sm:$0xff]
        %v272 = vld [vmem:[%s189 + $0x90] sm:$0xff]
        %v273 = vld [vmem:[%s189 + $0x98] sm:$0xff]
        %v274 = vld [vmem:[%s189 + $0xa0] sm:$0xff]
        %v275 = vld [vmem:[%s189 + $0xa8] sm:$0xff]
        %v276 = vld [vmem:[%s189 + $0xb0] sm:$0xff]
        %v277 = vld [vmem:[%s189 + $0xb8] sm:$0xff]
        %v278 = vld [vmem:[%s189 + $0xc0] sm:$0xff]
        %v279 = vld [vmem:[%s189 + $0xc8] sm:$0xff]
        %v280 = vld [vmem:[%s189 + $0xd0] sm:$0xff]
        %v281 = vld [vmem:[%s189 + $0xd8] sm:$0xff]
        %v282 = vld [vmem:[%s189 + $0xe0] sm:$0xff]
        %v283 = vld [vmem:[%s189 + $0xe8] sm:$0xff]
        %v284 = vld [vmem:[%s189 + $0xf0] sm:$0xff]
        %v285 = vld [vmem:[%s189 + $0xf8] sm:$0xff]
        %v286 = vld [vmem:[#allocation6] sm:$0xff]
        %v287 = vld [vmem:[#allocation6 + $0x8] sm:$0xff]
        %v288 = vld [vmem:[#allocation6 + $0x10] sm:$0xff]
        %v289 = vld [vmem:[#allocation6 + $0x18] sm:$0xff]
        %v290 = vld [vmem:[#allocation6 + $0x20] sm:$0xff]
        %v291 = vld [vmem:[#allocation6 + $0x28] sm:$0xff]
        %v292 = vld [vmem:[#allocation6 + $0x30] sm:$0xff]
        %v293 = vld [vmem:[#allocation6 + $0x38] sm:$0xff]
        %v294 = vld [vmem:[#allocation6 + $0x40] sm:$0xff]
        %v295 = vld [vmem:[#allocation6 + $0x48] sm:$0xff]
        %v296 = vld [vmem:[#allocation6 + $0x50] sm:$0xff]
        %v297 = vld [vmem:[#allocation6 + $0x58] sm:$0xff]
        %v298 = vld [vmem:[#allocation6 + $0x60] sm:$0xff]
        %v299 = vld [vmem:[#allocation6 + $0x68] sm:$0xff]
        %v300 = vld [vmem:[#allocation6 + $0x70] sm:$0xff]
        %v301 = vld [vmem:[#allocation6 + $0x78] sm:$0xff]
        %v302 = vld [vmem:[#allocation6 + $0x80] sm:$0xff]
        %v303 = vld [vmem:[#allocation6 + $0x88] sm:$0xff]
        %v304 = vld [vmem:[#allocation6 + $0x90] sm:$0xff]
        %v305 = vld [vmem:[#allocation6 + $0x98] sm:$0xff]
        %v306 = vld [vmem:[#allocation6 + $0xa0] sm:$0xff]
        %v307 = vld [vmem:[#allocation6 + $0xa8] sm:$0xff]
        %v308 = vld [vmem:[#allocation6 + $0xb0] sm:$0xff]
        %v309 = vld [vmem:[#allocation6 + $0xb8] sm:$0xff]
        %v310 = vld [vmem:[#allocation6 + $0xc0] sm:$0xff]
        %v311 = vld [vmem:[#allocation6 + $0xc8] sm:$0xff]
        %v312 = vld [vmem:[#allocation6 + $0xd0] sm:$0xff]
        %v313 = vld [vmem:[#allocation6 + $0xd8] sm:$0xff]
        %v314 = vld [vmem:[#allocation6 + $0xe0] sm:$0xff]
        %v315 = vld [vmem:[#allocation6 + $0xe8] sm:$0xff]
        %v316 = vld [vmem:[#allocation6 + $0xf0] sm:$0xff]
        %v317 = vld [vmem:[#allocation6 + $0xf8] sm:$0xff]
        %318 = vmatprep.subr.mxu0 0.0
        %319 = vmatpush1.msra.mxu0 %v301
        %320 = vmatprep.subr.mxu0 0.0
        %321 = vmatpush1.msra.mxu0 %v300
        %322 = vmatprep.subr.mxu0 0.0
        %323 = vmatpush1.msra.mxu0 %v299
        %324 = vmatprep.subr.mxu0 0.0
        %325 = vmatpush1.msra.mxu0 %v298
        %326 = vmatprep.subr.mxu0 0.0
        %327 = vmatpush1.msra.mxu0 %v297
        %328 = vmatprep.subr.mxu0 0.0
        %329 = vmatpush1.msra.mxu0 %v296
        %330 = vmatprep.subr.mxu0 0.0
        %331 = vmatpush1.msra.mxu0 %v295
        %332 = vmatprep.subr.mxu0 0.0
        %333 = vmatpush1.msra.mxu0 %v294
        %334 = vmatprep.subr.mxu0 0.0
        %335 = vmatpush1.msra.mxu0 %v293
        %336 = vmatprep.subr.mxu0 0.0
        %337 = vmatpush1.msra.mxu0 %v292
        %338 = vmatprep.subr.mxu0 0.0
        %339 = vmatpush1.msra.mxu0 %v291
        %340 = vmatprep.subr.mxu0 0.0
        %341 = vmatpush1.msra.mxu0 %v290
        %342 = vmatprep.subr.mxu0 0.0
        %343 = vmatpush1.msra.mxu0 %v289
        %344 = vmatprep.subr.mxu0 0.0
        %345 = vmatpush1.msra.mxu0 %v288
        %346 = vmatprep.subr.mxu0 0.0
        %347 = vmatpush1.msra.mxu0 %v287
        %348 = vmatprep.subr.mxu0 0.0
        %349 = vmatpush1.msra.mxu0 %v286
        %350 = vmatprep.subr.mxu0 0.0
        %351 = vmatpush2.msra.mxu0 %v317
        %352 = vmatprep.subr.mxu0 0.0
        %353 = vmatpush2.msra.mxu0 %v316
        %354 = vmatprep.subr.mxu0 0.0
        %355 = vmatpush2.msra.mxu0 %v315
        %356 = vmatprep.subr.mxu0 0.0
        %357 = vmatpush2.msra.mxu0 %v314
        %358 = vmatprep.subr.mxu0 0.0
        %359 = vmatpush2.msra.mxu0 %v313
        %360 = vmatprep.subr.mxu0 0.0
        %361 = vmatpush2.msra.mxu0 %v312
        %362 = vmatprep.subr.mxu0 0.0
        %363 = vmatpush2.msra.mxu0 %v311
        %364 = vmatprep.subr.mxu0 0.0
        %365 = vmatpush2.msra.mxu0 %v310
        %366 = vmatprep.subr.mxu0 0.0
        %367 = vmatpush2.msra.mxu0 %v309
        %368 = vmatprep.subr.mxu0 0.0
        %369 = vmatpush2.msra.mxu0 %v308
        %370 = vmatprep.subr.mxu0 0.0
        %371 = vmatpush2.msra.mxu0 %v307
        %372 = vmatprep.subr.mxu0 0.0
        %373 = vmatpush2.msra.mxu0 %v306
        %374 = vmatprep.subr.mxu0 0.0
        %375 = vmatpush2.msra.mxu0 %v305
        %376 = vmatprep.subr.mxu0 0.0
        %377 = vmatpush2.msra.mxu0 %v304
        %378 = vmatprep.subr.mxu0 0.0
        %379 = vmatpush2.msra.mxu0 %v303
        %380 = vmatprep.subr.mxu0 0.0
        %381 = vmatpush2.msra.mxu0 %v302
        %382 = vmatprep.mubr.f32.mxu0 %v255
        %383 = vmatmul.mubr.f32.gmra.mxu0 %v254
        %v384 = vpop.f32.mrf.mxu0
        %v385 = vadd.f32 0.0, %v384
        %v386 = vpop.f32.mrf.mxu0
        %387 = vmatprep.mubr.f32.mxu0 %v257
        %388 = vmatmul.mubr.f32.gmra.mxu0 %v256
        %v389 = vpop.f32.mrf.mxu0
        %v390 = vadd.f32 0.0, %v389
        %v391 = vpop.f32.mrf.mxu0
        %392 = vmatprep.mubr.f32.mxu0 %v259
        %393 = vmatmul.mubr.f32.gmra.mxu0 %v258
        %v394 = vpop.f32.mrf.mxu0
        %v395 = vadd.f32 0.0, %v394
        %v396 = vpop.f32.mrf.mxu0
        %397 = vmatprep.mubr.f32.mxu0 %v261
        %398 = vmatmul.mubr.f32.gmra.mxu0 %v260
        %v399 = vpop.f32.mrf.mxu0
        %v400 = vadd.f32 0.0, %v399
        %v401 = vpop.f32.mrf.mxu0
        %402 = vmatprep.mubr.f32.mxu0 %v263
        %403 = vmatmul.mubr.f32.gmra.mxu0 %v262
        %v404 = vpop.f32.mrf.mxu0
        %v405 = vadd.f32 0.0, %v404
        %v406 = vpop.f32.mrf.mxu0
        %407 = vmatprep.mubr.f32.mxu0 %v265
        %408 = vmatmul.mubr.f32.gmra.mxu0 %v264
        %v409 = vpop.f32.mrf.mxu0
        %v410 = vadd.f32 0.0, %v409
        %v411 = vpop.f32.mrf.mxu0
        %412 = vmatprep.mubr.f32.mxu0 %v267
        %413 = vmatmul.mubr.f32.gmra.mxu0 %v266
        %v414 = vpop.f32.mrf.mxu0
        %v415 = vadd.f32 0.0, %v414
        %v416 = vpop.f32.mrf.mxu0
        %417 = vmatprep.mubr.f32.mxu0 %v269
        %418 = vmatmul.mubr.f32.gmra.mxu0 %v268
        %v419 = vpop.f32.mrf.mxu0
        %v420 = vadd.f32 0.0, %v419
        %v421 = vpop.f32.mrf.mxu0
        %422 = vmatprep.mubr.f32.mxu0 %v271
        %423 = vmatmul.mubr.f32.gmra.mxu0 %v270
        %v424 = vpop.f32.mrf.mxu0
        %v425 = vadd.f32 0.0, %v424
        %v426 = vpop.f32.mrf.mxu0
        %427 = vmatprep.mubr.f32.mxu0 %v273
        %428 = vmatmul.mubr.f32.gmra.mxu0 %v272
        %v429 = vpop.f32.mrf.mxu0
        %v430 = vadd.f32 0.0, %v429
        %v431 = vpop.f32.mrf.mxu0
        %432 = vmatprep.mubr.f32.mxu0 %v275
        %433 = vmatmul.mubr.f32.gmra.mxu0 %v274
        %v434 = vpop.f32.mrf.mxu0
        %v435 = vadd.f32 0.0, %v434
        %v436 = vpop.f32.mrf.mxu0
        %437 = vmatprep.mubr.f32.mxu0 %v277
        %438 = vmatmul.mubr.f32.gmra.mxu0 %v276
        %v439 = vpop.f32.mrf.mxu0
        %v440 = vadd.f32 0.0, %v439
        %v441 = vpop.f32.mrf.mxu0
        %442 = vmatprep.mubr.f32.mxu0 %v279
        %443 = vmatmul.mubr.f32.gmra.mxu0 %v278
        %v444 = vpop.f32.mrf.mxu0
        %v445 = vadd.f32 0.0, %v444
        %v446 = vpop.f32.mrf.mxu0
        %447 = vmatprep.mubr.f32.mxu0 %v281
        %448 = vmatmul.mubr.f32.gmra.mxu0 %v280
        %v449 = vpop.f32.mrf.mxu0
        %v450 = vadd.f32 0.0, %v449
        %v451 = vpop.f32.mrf.mxu0
        %452 = vmatprep.mubr.f32.mxu0 %v283
        %453 = vmatmul.mubr.f32.gmra.mxu0 %v282
        %v454 = vpop.f32.mrf.mxu0
        %v455 = vadd.f32 0.0, %v454
        %v456 = vpop.f32.mrf.mxu0
        %457 = vmatprep.mubr.f32.mxu0 %v285
        %458 = vmatmul.mubr.f32.gmra.mxu0 %v284
        %v459 = vpop.f32.mrf.mxu0
        %v460 = vadd.f32 0.0, %v459
        %v461 = vpop.f32.mrf.mxu0
        %462 = vdwg.mxu0
        %v463 = vadd.f32 %v238, %v385
        %v464 = vadd.f32 %v239, %v390
        %v465 = vadd.f32 %v240, %v395
        %v466 = vadd.f32 %v241, %v400
        %v467 = vadd.f32 %v242, %v405
        %v468 = vadd.f32 %v243, %v410
        %v469 = vadd.f32 %v244, %v415
        %v470 = vadd.f32 %v245, %v420
        %v471 = vadd.f32 %v246, %v425
        %v472 = vadd.f32 %v247, %v430
        %v473 = vadd.f32 %v248, %v435
        %v474 = vadd.f32 %v249, %v440
        %v475 = vadd.f32 %v250, %v445
        %v476 = vadd.f32 %v251, %v450
        %v477 = vadd.f32 %v252, %v455
        %v478 = vadd.f32 %v253, %v460
        %479 = vst [vmem:[#allocation2] sm:$0xff] %v463
        %480 = vst [vmem:[#allocation2 + $0x8] sm:$0xff] %v464
        %481 = vst [vmem:[#allocation2 + $0x10] sm:$0xff] %v465
        %482 = vst [vmem:[#allocation2 + $0x18] sm:$0xff] %v466
        %483 = vst [vmem:[#allocation2 + $0x20] sm:$0xff] %v467
        %484 = vst [vmem:[#allocation2 + $0x28] sm:$0xff] %v468
        %485 = vst [vmem:[#allocation2 + $0x30] sm:$0xff] %v469
        %486 = vst [vmem:[#allocation2 + $0x38] sm:$0xff] %v470
        %487 = vst [vmem:[#allocation2 + $0x40] sm:$0xff] %v471
        %488 = vst [vmem:[#allocation2 + $0x48] sm:$0xff] %v472
        %489 = vst [vmem:[#allocation2 + $0x50] sm:$0xff] %v473
        %490 = vst [vmem:[#allocation2 + $0x58] sm:$0xff] %v474
        %491 = vst [vmem:[#allocation2 + $0x60] sm:$0xff] %v475
        %492 = vst [vmem:[#allocation2 + $0x68] sm:$0xff] %v476
        %493 = vst [vmem:[#allocation2 + $0x70] sm:$0xff] %v477
        %494 = vst [vmem:[#allocation2 + $0x78] sm:$0xff] %v478
        // Predicated region
        $region41: #{tpu_custom_call.1} parent=27 // pred_check
          %p495 = pneg %p218
        $region42: #{tpu_custom_call.1} parent=27 // pred_check_branch
          %497 = sbr.rel (%p495) target = $region44
        $region43: #{tpu_custom_call.1} parent=27 // pred_region
          %v498 = vld [vmem:[#allocation2] sm:$0xff]
          %v499 = vld [vmem:[#allocation2 + $0x8] sm:$0xff]
          %v500 = vld [vmem:[#allocation2 + $0x10] sm:$0xff]
          %v501 = vld [vmem:[#allocation2 + $0x18] sm:$0xff]
          %v502 = vld [vmem:[#allocation2 + $0x20] sm:$0xff]
          %v503 = vld [vmem:[#allocation2 + $0x28] sm:$0xff]
          %v504 = vld [vmem:[#allocation2 + $0x30] sm:$0xff]
          %v505 = vld [vmem:[#allocation2 + $0x38] sm:$0xff]
          %v506 = vld [vmem:[#allocation2 + $0x40] sm:$0xff]
          %v507 = vld [vmem:[#allocation2 + $0x48] sm:$0xff]
          %v508 = vld [vmem:[#allocation2 + $0x50] sm:$0xff]
          %v509 = vld [vmem:[#allocation2 + $0x58] sm:$0xff]
          %v510 = vld [vmem:[#allocation2 + $0x60] sm:$0xff]
          %v511 = vld [vmem:[#allocation2 + $0x68] sm:$0xff]
          %v512 = vld [vmem:[#allocation2 + $0x70] sm:$0xff]
          %v513 = vld [vmem:[#allocation2 + $0x78] sm:$0xff]
          %514 = vst [vmem:[%s213] sm:$0xff] %v498
          %515 = vst [vmem:[%s213 + $0x8] sm:$0xff] %v499
          %516 = vst [vmem:[%s213 + $0x10] sm:$0xff] %v500
          %517 = vst [vmem:[%s213 + $0x18] sm:$0xff] %v501
          %518 = vst [vmem:[%s213 + $0x20] sm:$0xff] %v502
          %519 = vst [vmem:[%s213 + $0x28] sm:$0xff] %v503
          %520 = vst [vmem:[%s213 + $0x30] sm:$0xff] %v504
          %521 = vst [vmem:[%s213 + $0x38] sm:$0xff] %v505
          %522 = vst [vmem:[%s213 + $0x40] sm:$0xff] %v506
          %523 = vst [vmem:[%s213 + $0x48] sm:$0xff] %v507
          %524 = vst [vmem:[%s213 + $0x50] sm:$0xff] %v508
          %525 = vst [vmem:[%s213 + $0x58] sm:$0xff] %v509
          %526 = vst [vmem:[%s213 + $0x60] sm:$0xff] %v510
          %527 = vst [vmem:[%s213 + $0x68] sm:$0xff] %v511
          %528 = vst [vmem:[%s213 + $0x70] sm:$0xff] %v512
          %529 = vst [vmem:[%s213 + $0x78] sm:$0xff] %v513
        $region44: #{tpu_custom_call.1} parent=27 // pred_fallthru
          _
        %s530 = sand.u32 %s105, 1
        %s531 = scalar_lea.sflag [#allocation5], %s530
        %s532 = sand.u32 %s105, 1
        %s533 = smul.addr %s532, 128
        %s534 = scalar_lea.vmem [#allocation8], %s533
        // Predicated region
        $region45: #{tpu_custom_call.1} parent=27 // pred_check
          %p535 = pneg %p115
        $region46: #{tpu_custom_call.1} parent=27 // pred_check_branch
          %537 = sbr.rel (%p535) target = $region48
        $region47: #{tpu_custom_call.1} parent=27 // pred_region
          %s538 = smul.u32 16, %s25
          %s540 = ssub.s32 2048, 2048
          %541 = vsyncadd %s531, %s540
          %s542 = sadd.s32 %s26, %s538
          %s543 = smul.addr %s542, 128
          %s544 = scalar_lea.hbm %s2, %s543
          %s545 = sshll.u32 %s534, 4
          %s546 = int_to_ptr.vmem [resolvable:$true] %s545
          %551 = dma.vmem_to_hbm [thread:$0]  %s546, 2048, %s544, %s531, 128, 128, 8
        $region48: #{tpu_custom_call.1} parent=27 // pred_fallthru
          _
      $region28: #{tpu_custom_call.1} parent=5 // pred_fallthru
        _
      %p552 = scmp.le.s32.totalorder 2, %s15
      // Predicated region
      $region49: #{tpu_custom_call.1} parent=5 // pred_check
        %p553 = pneg %p552
      $region50: #{tpu_custom_call.1} parent=5 // pred_check_branch
        %555 = sbr.rel (%p553) target = $region52
      $region51: #{tpu_custom_call.1} parent=5 // pred_region
        %s556 = ssub.s32 %s15, 2
        // Predicated region
        $region53: #{tpu_custom_call.1} parent=51 // pred_check
          %p557 = pneg %p121
        $region54: #{tpu_custom_call.1} parent=51 // pred_check_branch
          %559 = sbr.rel (%p557) target = $region56
        $region55: #{tpu_custom_call.1} parent=51 // pred_region
          %s560 = sand.u32 %s106, 1
          %s561 = scalar_lea.sflag [#allocation5], %s560
          %s562 = sand.u32 %s106, 1
          %s563 = smul.addr %s562, 128
          %s564 = scalar_lea.vmem [#allocation8], %s563
          %565 = dma.done %s561, 2048
        $region56: #{tpu_custom_call.1} parent=51 // pred_fallthru
          _
      $region52: #{tpu_custom_call.1} parent=5 // pred_fallthru
        _
    $region6: #{tpu_custom_call.1} parent=1 // loop_footer
      %s19 = sadd.s32 1, %s15
    $region7: #{tpu_custom_call.1} parent=1 // loop_footer_branch
      %14 = sbr.rel target = $region3
    $region8: #{tpu_custom_call.1} parent=1 // loop_exit
      _
    %566 = vsyncpa [#allocation4], 1
    %s567 = scalar_lea.sflag [#allocation4], 1
    %568 = vsyncpa %s567, 1
    %569 = vsyncpa [#allocation7], 1
    %570 = vsyncpa [#allocation5], 1
    %s571 = scalar_lea.sflag [#allocation5], 1
    %572 = vsyncpa %s571, 1

</llo_original>
